<compile_context>
chip_gen: v5e
topology: v5e:2x2
jax: 0.10.0
libtpu: 0.0.40
codegen_flags: <defaults>
</compile_context>

<pallas_src>
import functools

import jax
import jax.numpy as jnp
from jax import lax
from jax.experimental import pallas as pl
from jax.experimental.pallas import tpu as pltpu


def _rup(v, m):
    return ((v + m - 1) // m) * m


def dgcnn_kernel(xc_ref, base_ref, proj_ref, sqc_ref, w_ref, o_ref, *,
                 k, tn, nbits, h_dim, c_pad, r_b2, r_wo, r_bo):
    f32 = jnp.float32

    xc = xc_ref[...]                                  # [N, F] candidate set
    n = xc.shape[0]

    # Query rows are a slice of the resident candidate tile (x DMA'd once/graph).
    start = pl.multiple_of(pl.program_id(1) * tn, 8)
    xq = xc_ref[pl.ds(start, tn), :]                  # [tn, F]

    # ---- kNN selection keys --------------------------------------------------
    # trans-B gram via dot_general (contract last dims; no XLU transpose of xc).
    gram = lax.dot_general(xq, xc, (((1,), (1,)), ((), ())),
                           preferred_element_type=f32)            # [tn, N]
    # Row term ||x_i||^2 dropped: per-row argmin is invariant to it.
    d2 = sqc_ref[...] - 2.0 * gram                                # [tn, N]

    # Pack the candidate column index into the low mantissa bits of d2 so ONE
    # float min per row gives both the min and the argmin; packed keys are
    # unique per row, so (keys == kmin) is an exact one-hot (no arg recovery).
    col = lax.broadcasted_iota(jnp.int32, (tn, n), 1)
    mask = (1 << nbits) - 1
    kbits = (pltpu.bitcast(d2, jnp.int32) & jnp.int32(~mask)) | col
    keys = pltpu.bitcast(kbits, f32)

    # ---- iterative top-k: build the k one-hot selectors (cheap VPU/XLU chain) -
    inf = jnp.float32(jnp.inf)
    sels = []
    for _ in range(k):
        kmin = jnp.min(keys, axis=-1, keepdims=True)              # fused min+arg
        sel = keys == kmin                                        # exact one-hot
        keys = jnp.where(sel, inf, keys)                          # mask chosen
        sels.append(sel.astype(f32))
    sel_all = jnp.concatenate(sels, axis=0)                       # [k*tn, N]

    # ---- batched MLP over all k neighbours (2 big MXU calls instead of 2k) ---
    proj = proj_ref[...]                                          # [N, H] = x@w1b
    base = base_ref[...]                                          # [tn, H]
    pj = jnp.dot(sel_all, proj, preferred_element_type=f32)       # [k*tn, H]
    base_k = jnp.concatenate([base] * k, axis=0)                  # [k*tn, H]
    h = jnp.maximum(pj + base_k, 0.0)                             # ReLU

    w2 = w_ref[0:h_dim, 0:h_dim]                                  # [H, H]
    b2 = w_ref[r_b2:r_b2 + 1, 0:h_dim]                            # [1, H]
    z = jnp.dot(h, w2, preferred_element_type=f32) + b2           # [k*tn, H]
    zm = jnp.max(z, axis=-1, keepdims=True)                       # LogSoftmax(-1)
    logp = (z - zm) - jnp.log(jnp.sum(jnp.exp(z - zm), axis=-1, keepdims=True))

    # max aggregation over the k neighbours: vreg-aligned static slices.
    agg = logp[0:tn]
    for j in range(1, k):
        agg = jnp.maximum(agg, logp[j * tn:(j + 1) * tn])         # [tn, H]

    # ---- output head: Linear + Softmax(-1), lane-dense (Cpad=128) store ------
    wo = w_ref[r_wo:r_wo + h_dim, 0:c_pad]    # cols >= C are zero
    bo = w_ref[r_bo:r_bo + 1, 0:c_pad]        # cols >= C are -1e30 -> prob 0
    logits = jnp.dot(agg, wo, preferred_element_type=f32) + bo    # [tn, Cpad]
    lm = jnp.max(logits, axis=-1, keepdims=True)
    e = jnp.exp(logits - lm)
    s = jnp.sum(e, axis=-1, keepdims=True)
    o_ref[...] = e * pl.reciprocal(s, approx=True)                # EUP reciprocal


def gnn_dgcnn_forward(x, params, *, k, edge_index=None, row_tile=128,
                      vmem_limit_bytes=32 * 1024 * 1024):
    """x: [B, N, F] node features per graph. edge_index unused (dynamic=True).

    row_tile: largest row tile that fits VMEM; the [tn,N] selection tiles are the
    working-set driver — drop to 64 for N in the thousands on v7x (64 MiB VMEM);
    on v6e raise vmem_limit_bytes (64-96 MiB) and use the biggest tile that fits.
    """
    del edge_index
    w1a, w1b, b1, w2, b2, wo, bo = params
    B, N, F = x.shape
    H = w2.shape[0]
    C = wo.shape[1]
    f32 = jnp.float32
    x = x.astype(f32)

    tn = min(row_tile, N)
    if B == 1 and N // tn < 2:
        # keep >=2 parallel grid points so both v7x TensorCores are fed
        half = (N // 2) // 8 * 8
        if half >= 8 and N % half == 0:
            tn = half
    assert N % tn == 0 and tn % 8 == 0, "row tile must divide N and be 8-aligned"
    nbits = max(1, (N - 1).bit_length())

    # ---- per-graph invariants hoisted to XLA (once per graph, not per tile) ---
    hp = lax.Precision.HIGHEST
    base = jnp.einsum("bnf,fh->bnh", x, (w1a - w1b).astype(f32),
                      precision=hp) + b1.astype(f32)              # [B, N, H]
    proj = jnp.einsum("bnf,fh->bnh", x, w1b.astype(f32),
                      precision=hp)                               # [B, N, H]
    sqc = jnp.swapaxes(jnp.sum(x * x, axis=-1, keepdims=True), 1, 2)  # [B, 1, N]

    # ---- pack remaining small weights into one lane-dense buffer --------------
    c_pad = _rup(max(C, 1), 128)           # lane-dense output width
    wcols = max(_rup(H, 128), c_pad)
    r_b2 = _rup(H, 8)
    r_wo = r_b2 + 8
    r_bo = r_wo + _rup(H, 8)
    rows = r_bo + 8
    packed = jnp.zeros((rows, wcols), f32)
    packed = packed.at[0:H, 0:H].set(w2.astype(f32))
    packed = packed.at[r_b2, 0:H].set(b2.reshape(-1).astype(f32))
    packed = packed.at[r_wo:r_wo + H, 0:C].set(wo.astype(f32))
    packed = packed.at[r_bo, 0:C].set(bo.reshape(-1).astype(f32))
    if c_pad > C:
        # -1e30 bias in the padded logits columns -> their softmax prob is ~0.
        packed = packed.at[r_bo, C:c_pad].set(-1e30)

    kernel = functools.partial(
        dgcnn_kernel, k=k, tn=tn, nbits=nbits, h_dim=H, c_pad=c_pad,
        r_b2=r_b2, r_wo=r_wo, r_bo=r_bo)

    out = pl.pallas_call(
        kernel,
        out_shape=jax.ShapeDtypeStruct((B, N, c_pad), f32),
        grid=(B, N // tn),
        in_specs=[
            pl.BlockSpec((None, N, F), lambda b, i: (b, 0, 0)),    # x (candidates)
            pl.BlockSpec((None, tn, H), lambda b, i: (b, i, 0)),   # base row tile
            pl.BlockSpec((None, N, H), lambda b, i: (b, 0, 0)),    # proj (graph)
            pl.BlockSpec((None, 1, N), lambda b, i: (b, 0, 0)),    # sqc  (graph)
            pl.BlockSpec((rows, wcols), lambda b, i: (0, 0)),      # packed weights
        ],
        out_specs=pl.BlockSpec((None, tn, c_pad), lambda b, i: (b, i, 0)),
        compiler_params=pltpu.CompilerParams(
            dimension_semantics=("parallel", "parallel"),
            vmem_limit_bytes=vmem_limit_bytes),
    )(x, base, proj, sqc, packed)
    return out[..., :C]


def _reference_single(x, params, *, k):
    """Pure-JAX reference for one graph (jax.lax.top_k neighbour selection)."""
    w1a, w1b, b1, w2, b2, wo, bo = params
    N, F = x.shape
    sq = jnp.sum(x * x, axis=-1, keepdims=True)
    d2 = sq + sq.T - 2.0 * (x @ x.T)
    _, nbr = jax.lax.top_k(-d2, k)                           # k nearest (incl. self)
    xi = jnp.broadcast_to(x[:, None, :], (N, k, F))
    xj = x[nbr]                                              # [N, k, F]
    h = jnp.maximum(xi @ w1a + (xj - xi) @ w1b + b1, 0.0)
    z = h @ w2 + b2
    logp = jax.nn.log_softmax(z, axis=-1)
    agg = jnp.max(logp, axis=1)                              # max over neighbours
    logits = agg @ wo + bo
    return jax.nn.softmax(logits, axis=-1)


def reference_forward(x, params, *, k):
    return jax.vmap(lambda xb: _reference_single(xb, params, k=k))(x)


def init_params(key, input_dim, output_dim):
    """Deterministic synthetic weights (PyTorch-style uniform init).

    num_layers=1 => hidden_dim = output_dim.
    MLP: Linear(2*input_dim, H) -> ReLU -> Linear(H, H) -> LogSoftmax
    Output head: Linear(H, output_dim) -> Softmax
    """
    H = output_dim
    ks = jax.random.split(key, 7)

    def lin(kw, kb, fan_in, fan_out):
        bound = 1.0 / jnp.sqrt(fan_in)
        w = jax.random.uniform(kw, (fan_in, fan_out), jnp.float32, -bound, bound)
        b = jax.random.uniform(kb, (1, fan_out), jnp.float32, -bound, bound)
        return w, b

    # first MLP layer Linear(2*input_dim, H) split into x_i and (x_j - x_i) halves
    bound1 = 1.0 / jnp.sqrt(2 * input_dim)
    w1a = jax.random.uniform(ks[0], (input_dim, H), jnp.float32, -bound1, bound1)
    w1b = jax.random.uniform(ks[1], (input_dim, H), jnp.float32, -bound1, bound1)
    b1 = jax.random.uniform(ks[2], (1, H), jnp.float32, -bound1, bound1)
    w2, b2 = lin(ks[3], ks[4], H, H)
    wo, bo = lin(ks[5], ks[6], H, output_dim)
    return (w1a, w1b, b1, w2, b2, wo, bo)


if __name__ == "__main__":
    # Small synthetic problem: batch of 2 graphs, N=32 nodes, F=8, C=16, k=4.
    B, N, INPUT_DIM, OUTPUT_DIM, K = 2, 32, 8, 16, 4

    key = jax.random.PRNGKey(0)
    kx, kp = jax.random.split(key)
    x = jax.random.normal(kx, (B, N, INPUT_DIM), jnp.float32)
    params = init_params(kp, INPUT_DIM, OUTPUT_DIM)

    out = jax.block_until_ready(gnn_dgcnn_forward(x, params, k=K, row_tile=32))
    ref = jax.block_until_ready(reference_forward(x, params, k=K))
    assert out.shape == (B, N, OUTPUT_DIM)
    # Tolerance slightly relaxed vs exact math: approx EUP reciprocal in the
    # output softmax + folded (w1a - w1b) reassociation.  Note: output rows do
    # not sum exactly to 1 (~1e-3 rel) because of the approximate reciprocal.
    assert jnp.allclose(out, ref, atol=2e-3, rtol=2e-3), (
        f"max abs diff {jnp.max(jnp.abs(out - ref))}")

    print("KERNEL_OK")
</pallas_src>

<mosaic_0001>
module attributes {stable_mosaic.version = 11 : i64} {
  func.func @dgcnn_kernel(%arg0: i32, %arg1: i32, %arg2: memref<1x32x8xf32, #tpu.memory_space<vmem>>, %arg3: memref<1x32x16xf32, #tpu.memory_space<vmem>>, %arg4: memref<1x32x16xf32, #tpu.memory_space<vmem>>, %arg5: memref<1x1x32xf32, #tpu.memory_space<vmem>>, %arg6: memref<48x128xf32, #tpu.memory_space<vmem>>, %arg7: memref<1x32x128xf32, #tpu.memory_space<vmem>>) attributes {dimension_semantics = [#tpu.dimension_semantics<parallel>, #tpu.dimension_semantics<parallel>], iteration_bounds = array<i64: 2, 1>, scalar_prefetch = 0 : i64, scratch_operands = 0 : i64, tpu.core_type = #tpu.core_type<tc>, window_params = [{transform_indices = @transform_0, window_bounds = array<i64: 1, 32, 8>}, {transform_indices = @transform_1, window_bounds = array<i64: 1, 32, 16>}, {transform_indices = @transform_2, window_bounds = array<i64: 1, 32, 16>}, {transform_indices = @transform_3, window_bounds = array<i64: 1, 1, 32>}, {pipeline_mode = #tpu.pipeline_mode<synchronous>, transform_indices = @transform_4, window_bounds = array<i64: 48, 128>}, {transform_indices = @transform_5, window_bounds = array<i64: 1, 32, 128>}]} {
    %c0 = arith.constant 0 : index
    %c0_0 = arith.constant 0 : index
    %c0_1 = arith.constant 0 : index
    %0 = vector.load %arg2[%c0, %c0_0, %c0_1] : memref<1x32x8xf32, #tpu.memory_space<vmem>>, vector<1x32x8xf32>
    %1 = vector.shape_cast %0 : vector<1x32x8xf32> to vector<32x8xf32>
    %c32_i32 = arith.constant 32 : i32
    %2 = arith.muli %arg1, %c32_i32 : i32
    %3 = tpu.assume_multiple %2, 8 : i32
    %c0_2 = arith.constant 0 : index
    %4 = arith.index_cast %3 : i32 to index
    %c0_3 = arith.constant 0 : index
    %5 = vector.load %arg2[%c0_2, %4, %c0_3] : memref<1x32x8xf32, #tpu.memory_space<vmem>>, vector<1x32x8xf32>
    %6 = vector.shape_cast %5 : vector<1x32x8xf32> to vector<32x8xf32>
    %cst = arith.constant dense<0.000000e+00> : vector<32x32xf32>
    %7 = tpu.matmul %6, %1, %cst {dimension_numbers = #tpu.dot_dimension_numbers<[1], [1], [0], [0], [0, 0, 1, 0], [], []>} : vector<32x8xf32>, vector<32x8xf32>, vector<32x32xf32> -> vector<32x32xf32>
    %c0_4 = arith.constant 0 : index
    %c0_5 = arith.constant 0 : index
    %c0_6 = arith.constant 0 : index
    %8 = vector.load %arg5[%c0_4, %c0_5, %c0_6] : memref<1x1x32xf32, #tpu.memory_space<vmem>>, vector<1x1x32xf32>
    %9 = vector.shape_cast %8 : vector<1x1x32xf32> to vector<1x32xf32>
    %cst_7 = arith.constant 2.000000e+00 : f32
    %10 = vector.broadcast %cst_7 : f32 to vector<32x32xf32>
    %11 = arith.mulf %10, %7 : vector<32x32xf32>
    %12 = vector.broadcast %9 : vector<1x32xf32> to vector<32x32xf32>
    %13 = arith.subf %12, %11 : vector<32x32xf32>
    %14 = tpu.iota {dimensions = array<i32: 1>} : vector<32x32xi32>
    %15 = tpu.bitcast %13 : vector<32x32xf32> -> vector<32x32xi32>
    %c-32_i32 = arith.constant -32 : i32
    %16 = vector.broadcast %c-32_i32 : i32 to vector<32x32xi32>
    %17 = arith.andi %15, %16 : vector<32x32xi32>
    %18 = arith.ori %17, %14 : vector<32x32xi32>
    %19 = tpu.bitcast %18 : vector<32x32xi32> -> vector<32x32xf32>
    %cst_8 = arith.constant dense<0x7F800000> : vector<32xf32>
    %20 = vector.multi_reduction <minimumf>, %19, %cst_8 [1] : vector<32x32xf32> to vector<32xf32>
    %21 = vector.shape_cast %20 : vector<32xf32> to vector<32x1xf32>
    %22 = vector.broadcast %21 : vector<32x1xf32> to vector<32x32xf32>
    %23 = arith.cmpf oeq, %19, %22 : vector<32x32xf32>
    %cst_9 = arith.constant 0x7F800000 : f32
    %24 = vector.broadcast %cst_9 : f32 to vector<32x32xf32>
    %25 = arith.select %23, %24, %19 : vector<32x32xi1>, vector<32x32xf32>
    %26 = arith.extui %23 : vector<32x32xi1> to vector<32x32xi32>
    %27 = arith.sitofp %26 : vector<32x32xi32> to vector<32x32xf32>
    %cst_10 = arith.constant dense<0x7F800000> : vector<32xf32>
    %28 = vector.multi_reduction <minimumf>, %25, %cst_10 [1] : vector<32x32xf32> to vector<32xf32>
    %29 = vector.shape_cast %28 : vector<32xf32> to vector<32x1xf32>
    %30 = vector.broadcast %29 : vector<32x1xf32> to vector<32x32xf32>
    %31 = arith.cmpf oeq, %25, %30 : vector<32x32xf32>
    %cst_11 = arith.constant 0x7F800000 : f32
    %32 = vector.broadcast %cst_11 : f32 to vector<32x32xf32>
    %33 = arith.select %31, %32, %25 : vector<32x32xi1>, vector<32x32xf32>
    %34 = arith.extui %31 : vector<32x32xi1> to vector<32x32xi32>
    %35 = arith.sitofp %34 : vector<32x32xi32> to vector<32x32xf32>
    %cst_12 = arith.constant dense<0x7F800000> : vector<32xf32>
    %36 = vector.multi_reduction <minimumf>, %33, %cst_12 [1] : vector<32x32xf32> to vector<32xf32>
    %37 = vector.shape_cast %36 : vector<32xf32> to vector<32x1xf32>
    %38 = vector.broadcast %37 : vector<32x1xf32> to vector<32x32xf32>
    %39 = arith.cmpf oeq, %33, %38 : vector<32x32xf32>
    %cst_13 = arith.constant 0x7F800000 : f32
    %40 = vector.broadcast %cst_13 : f32 to vector<32x32xf32>
    %41 = arith.select %39, %40, %33 : vector<32x32xi1>, vector<32x32xf32>
    %42 = arith.extui %39 : vector<32x32xi1> to vector<32x32xi32>
    %43 = arith.sitofp %42 : vector<32x32xi32> to vector<32x32xf32>
    %cst_14 = arith.constant dense<0x7F800000> : vector<32xf32>
    %44 = vector.multi_reduction <minimumf>, %41, %cst_14 [1] : vector<32x32xf32> to vector<32xf32>
    %45 = vector.shape_cast %44 : vector<32xf32> to vector<32x1xf32>
    %46 = vector.broadcast %45 : vector<32x1xf32> to vector<32x32xf32>
    %47 = arith.cmpf oeq, %41, %46 : vector<32x32xf32>
    %48 = arith.extui %47 : vector<32x32xi1> to vector<32x32xi32>
    %49 = arith.sitofp %48 : vector<32x32xi32> to vector<32x32xf32>
    %50 = tpu.concatenate %27, %35, %43, %49 in 0 : vector<32x32xf32>, vector<32x32xf32>, vector<32x32xf32>, vector<32x32xf32> -> vector<128x32xf32>
    %c0_15 = arith.constant 0 : index
    %c0_16 = arith.constant 0 : index
    %c0_17 = arith.constant 0 : index
    %51 = vector.load %arg4[%c0_15, %c0_16, %c0_17] : memref<1x32x16xf32, #tpu.memory_space<vmem>>, vector<1x32x16xf32>
    %52 = vector.shape_cast %51 : vector<1x32x16xf32> to vector<32x16xf32>
    %c0_18 = arith.constant 0 : index
    %c0_19 = arith.constant 0 : index
    %c0_20 = arith.constant 0 : index
    %53 = vector.load %arg3[%c0_18, %c0_19, %c0_20] : memref<1x32x16xf32, #tpu.memory_space<vmem>>, vector<1x32x16xf32>
    %54 = vector.shape_cast %53 : vector<1x32x16xf32> to vector<32x16xf32>
    %cst_21 = arith.constant dense<0.000000e+00> : vector<128x16xf32>
    %55 = tpu.matmul %50, %52, %cst_21 {dimension_numbers = #tpu.dot_dimension_numbers<[1], [0], [0], [1], [0, 0, 1, 1], [], []>} : vector<128x32xf32>, vector<32x16xf32>, vector<128x16xf32> -> vector<128x16xf32>
    %56 = tpu.concatenate %54, %54, %54, %54 in 0 : vector<32x16xf32>, vector<32x16xf32>, vector<32x16xf32>, vector<32x16xf32> -> vector<128x16xf32>
    %57 = arith.addf %55, %56 : vector<128x16xf32>
    %cst_22 = arith.constant 0.000000e+00 : f32
    %58 = vector.broadcast %cst_22 : f32 to vector<128x16xf32>
    %59 = arith.maximumf %57, %58 : vector<128x16xf32>
    %c0_23 = arith.constant 0 : index
    %c0_24 = arith.constant 0 : index
    %60 = vector.load %arg6[%c0_23, %c0_24] : memref<48x128xf32, #tpu.memory_space<vmem>>, vector<16x16xf32>
    %c16 = arith.constant 16 : index
    %c0_25 = arith.constant 0 : index
    %61 = vector.load %arg6[%c16, %c0_25] : memref<48x128xf32, #tpu.memory_space<vmem>>, vector<1x16xf32>
    %cst_26 = arith.constant dense<0.000000e+00> : vector<128x16xf32>
    %62 = tpu.matmul %59, %60, %cst_26 {dimension_numbers = #tpu.dot_dimension_numbers<[1], [0], [0], [1], [0, 0, 1, 1], [], []>} : vector<128x16xf32>, vector<16x16xf32>, vector<128x16xf32> -> vector<128x16xf32>
    %63 = vector.broadcast %61 : vector<1x16xf32> to vector<128x16xf32>
    %64 = arith.addf %62, %63 : vector<128x16xf32>
    %cst_27 = arith.constant dense<0xFF800000> : vector<128xf32>
    %65 = vector.multi_reduction <maximumf>, %64, %cst_27 [1] : vector<128x16xf32> to vector<128xf32>
    %66 = vector.shape_cast %65 : vector<128xf32> to vector<128x1xf32>
    %67 = vector.broadcast %66 : vector<128x1xf32> to vector<128x16xf32>
    %68 = arith.subf %64, %67 : vector<128x16xf32>
    %69 = vector.broadcast %66 : vector<128x1xf32> to vector<128x16xf32>
    %70 = arith.subf %64, %69 : vector<128x16xf32>
    %71 = math.exp %70 : vector<128x16xf32>
    %cst_28 = arith.constant dense<0.000000e+00> : vector<128xf32>
    %72 = vector.multi_reduction <add>, %71, %cst_28 [1] : vector<128x16xf32> to vector<128xf32>
    %73 = vector.shape_cast %72 : vector<128xf32> to vector<128x1xf32>
    %74 = math.log %73 : vector<128x1xf32>
    %75 = vector.broadcast %74 : vector<128x1xf32> to vector<128x16xf32>
    %76 = arith.subf %68, %75 : vector<128x16xf32>
    %77 = vector.extract_strided_slice %76 {offsets = [0, 0], sizes = [32, 16], strides = [1, 1]} : vector<128x16xf32> to vector<32x16xf32>
    %78 = vector.extract_strided_slice %76 {offsets = [32, 0], sizes = [32, 16], strides = [1, 1]} : vector<128x16xf32> to vector<32x16xf32>
    %79 = arith.maximumf %77, %78 : vector<32x16xf32>
    %80 = vector.extract_strided_slice %76 {offsets = [64, 0], sizes = [32, 16], strides = [1, 1]} : vector<128x16xf32> to vector<32x16xf32>
    %81 = arith.maximumf %79, %80 : vector<32x16xf32>
    %82 = vector.extract_strided_slice %76 {offsets = [96, 0], sizes = [32, 16], strides = [1, 1]} : vector<128x16xf32> to vector<32x16xf32>
    %83 = arith.maximumf %81, %82 : vector<32x16xf32>
    %c24 = arith.constant 24 : index
    %c0_29 = arith.constant 0 : index
    %84 = vector.load %arg6[%c24, %c0_29] : memref<48x128xf32, #tpu.memory_space<vmem>>, vector<16x128xf32>
    %c40 = arith.constant 40 : index
    %c0_30 = arith.constant 0 : index
    %85 = vector.load %arg6[%c40, %c0_30] : memref<48x128xf32, #tpu.memory_space<vmem>>, vector<1x128xf32>
    %cst_31 = arith.constant dense<0.000000e+00> : vector<32x128xf32>
    %86 = tpu.matmul %83, %84, %cst_31 {dimension_numbers = #tpu.dot_dimension_numbers<[1], [0], [0], [1], [0, 0, 1, 1], [], []>} : vector<32x16xf32>, vector<16x128xf32>, vector<32x128xf32> -> vector<32x128xf32>
    %87 = vector.broadcast %85 : vector<1x128xf32> to vector<32x128xf32>
    %88 = arith.addf %86, %87 : vector<32x128xf32>
    %cst_32 = arith.constant dense<0xFF800000> : vector<32xf32>
    %89 = vector.multi_reduction <maximumf>, %88, %cst_32 [1] : vector<32x128xf32> to vector<32xf32>
    %90 = vector.shape_cast %89 : vector<32xf32> to vector<32x1xf32>
    %91 = vector.broadcast %90 : vector<32x1xf32> to vector<32x128xf32>
    %92 = arith.subf %88, %91 : vector<32x128xf32>
    %93 = math.exp %92 : vector<32x128xf32>
    %cst_33 = arith.constant dense<0.000000e+00> : vector<32xf32>
    %94 = vector.multi_reduction <add>, %93, %cst_33 [1] : vector<32x128xf32> to vector<32xf32>
    %95 = vector.shape_cast %94 : vector<32xf32> to vector<32x1xf32>
    %96 = tpu.reciprocal %95 {approx = true} : vector<32x1xf32> -> vector<32x1xf32>
    %97 = vector.broadcast %96 : vector<32x1xf32> to vector<32x128xf32>
    %98 = arith.mulf %93, %97 : vector<32x128xf32>
    %c0_34 = arith.constant 0 : index
    %c0_35 = arith.constant 0 : index
    %c0_36 = arith.constant 0 : index
    %99 = vector.load %arg7[%c0_34, %c0_35, %c0_36] : memref<1x32x128xf32, #tpu.memory_space<vmem>>, vector<1x32x128xf32>
    %100 = vector.shape_cast %99 : vector<1x32x128xf32> to vector<32x128xf32>
    %101 = vector.shape_cast %98 : vector<32x128xf32> to vector<1x32x128xf32>
    tpu.vector_store %arg7[%c0_34, %c0_35, %c0_36], %101 {strides = array<i32>} : memref<1x32x128xf32, #tpu.memory_space<vmem>>, vector<1x32x128xf32>,
    return
  }
  func.func @transform_0(%arg0: i32, %arg1: i32) -> (i32, i32, i32) {
    %c0_i32 = arith.constant 0 : i32
    %c0_i32_0 = arith.constant 0 : i32
    %c0_i32_1 = arith.constant 0 : i32
    return %arg0, %c0_i32, %c0_i32_0 : i32, i32, i32
  }
  func.func @transform_1(%arg0: i32, %arg1: i32) -> (i32, i32, i32) {
    %c0_i32 = arith.constant 0 : i32
    %c0_i32_0 = arith.constant 0 : i32
    return %arg0, %arg1, %c0_i32 : i32, i32, i32
  }
  func.func @transform_2(%arg0: i32, %arg1: i32) -> (i32, i32, i32) {
    %c0_i32 = arith.constant 0 : i32
    %c0_i32_0 = arith.constant 0 : i32
    %c0_i32_1 = arith.constant 0 : i32
    return %arg0, %c0_i32, %c0_i32_0 : i32, i32, i32
  }
  func.func @transform_3(%arg0: i32, %arg1: i32) -> (i32, i32, i32) {
    %c0_i32 = arith.constant 0 : i32
    %c0_i32_0 = arith.constant 0 : i32
    %c0_i32_1 = arith.constant 0 : i32
    return %arg0, %c0_i32, %c0_i32_0 : i32, i32, i32
  }
  func.func @transform_4(%arg0: i32, %arg1: i32) -> (i32, i32) {
    %c0_i32 = arith.constant 0 : i32
    %c0_i32_0 = arith.constant 0 : i32
    %c0_i32_1 = arith.constant 0 : i32
    return %c0_i32, %c0_i32_0 : i32, i32
  }
  func.func @transform_5(%arg0: i32, %arg1: i32) -> (i32, i32, i32) {
    %c0_i32 = arith.constant 0 : i32
    %c0_i32_0 = arith.constant 0 : i32
    return %arg0, %arg1, %c0_i32 : i32, i32, i32
  }
}

</mosaic_0001>

<llo_original>
// kernel: tpu_custom_call.1
$region0: #{tpu_custom_call.1}
  #allocation0 [shape = 'u32[]', space=smem, size = 0x4, offset = 0x4, fixed_abs, tag = 'smem constant byte address 0x4 - core index']
  #allocation1 [shape = 'u32[72,128]{1,0:T(1,128)}', space=vmem, size = 0x9000, scoped, tag = 'internal scratch']
  %s0 = inlined_call_operand.vmem [shape: f32[2,32,8], index: 0, kind: input, shape index: {}]
  %s1 = inlined_call_operand.vmem [shape: f32[2,32,16], index: 1, kind: input, shape index: {}]
  %s2 = inlined_call_operand.vmem [shape: f32[2,32,16], index: 2, kind: input, shape index: {}]
  %s3 = inlined_call_operand.vmem [shape: f32[2,1,32], index: 3, kind: input, shape index: {}]
  %s4 = inlined_call_operand.vmem [shape: f32[48,128], index: 4, kind: input, shape index: {}]
  %s5 = inlined_call_operand.hbm [shape: f32[2,32,128], index: 5, kind: output, shape index: {}]
  %s6 = sld [smem:[#allocation0]]
  $region53: #{tpu_custom_call.1} parent=0
    _
  %s8 = ssub.s32 1, %s6
  %s9 = scalar_select 0, %s8, %s6
  $region1: #{tpu_custom_call.1} parent=0
    #allocation2 [shape = 'u8[32768]{0}', space=vmem, size = 0x8000, scoped, tag = 'output window, operand 0']
    #allocation3 [shape = 's32[2]{0}', space=sflag, size = 0x8, scoped, tag = 'scoped memory for tpu_custom_call.1']
    %10 = vsyncpa [#allocation3], 0
    %s11 = scalar_lea.sflag [#allocation3], 1
    %12 = vsyncpa %s11, 0
    loop: start=0, step=1, limit=4
    $region2: #{tpu_custom_call.1} parent=1 // loop_pre_header
      _
    $region3: #{tpu_custom_call.1} parent=1 // loop_header
      %s14 = sphi 0, %s18
      %p15 = scmp.ge.s32.totalorder %s14, 4
      %s21 = sphi 0, %s33
      %s22 = sphi 0, %s29
      %s23 = sphi 0, %s21
      %s24 = sphi 0, %s22
      %s25 = sphi 0, %s23
      %s26 = sphi 0, %s24
      %s36 = sphi 0, %s38
      %s39 = sphi 0, %s36
      %s40 = sphi 0, %s39
      %s56 = sphi 0, %s40
      %s64 = sphi 0, %s66
      %s67 = sphi 0, %s64
      %s68 = sphi 0, %s67
      %s84 = sphi 0, %s68
      %s90 = sphi 0, %s92
      %s93 = sphi 0, %s90
      %s94 = sphi 0, %s93
      %s110 = sphi 0, %s94
      %s116 = sphi 0, %s118
      %s119 = sphi 0, %s116
      %s120 = sphi 0, %s119
      %s136 = sphi 0, %s120
      %s140 = sphi 0, %s140
      %s142 = sphi 0, %s140
      %s143 = sphi 0, %s142
      %s157 = sphi 0, %s143
      %s165 = sphi 0, %s167
      %s168 = sphi 0, %s165
      %s169 = sphi 0, %s168
      %s185 = sphi 0, %s169
    $region4: #{tpu_custom_call.1} parent=1 // loop_header_branch
      %17 = sbr.rel (%p15) target = $region8
    $region5: #{tpu_custom_call.1} parent=1 // loop_body
      %s19 = ssub.s32 %s14, 1
      %s20 = ssub.s32 %s14, 2
      %s27 = sadd.s32 1, %s22
      %p28 = scmp.ge.s32.totalorder %s27, 1
      %s29 = scalar_select %p28, 0, %s27
      %s30 = sadd.s32 1, %s21
      %s31 = scalar_select %p28, %s30, %s21
      %p32 = scmp.ge.s32.totalorder %s31, 2
      %s33 = scalar_select %p32, 0, %s31
      %s34 = ssub.s32 %s21, %s33
      %p35 = scmp.eq.s32.totalorder %s34, 0
      %s37 = sadd.s32 %s36, 1
      %s38 = scalar_select %p35, %s36, %s37
      %p41 = pneg %p35
      %p42 = scmp.eq.s32.totalorder %s14, 1
      %p43 = por %p41, %p42
      %p44 = scmp.ne.s32.totalorder %s36, %s39
      %p45 = scmp.eq.s32.totalorder %s14, 0
      %p46 = por %p44, %p45
      %p47 = scmp.ne.s32.totalorder %s36, %s39
      %p48 = scmp.eq.s32.totalorder %s19, 1
      %p49 = por %p47, %p48
      %p50 = scmp.ne.s32.totalorder %s39, %s40
      %p51 = scmp.eq.s32.totalorder %s19, 0
      %p52 = por %p50, %p51
      %p53 = scmp.ne.s32.totalorder %s39, %s40
      %p54 = scmp.eq.s32.totalorder %s20, 1
      %p55 = por %p53, %p54
      %p57 = scmp.ne.s32.totalorder %s40, %s56
      %p58 = scmp.eq.s32.totalorder %s20, 0
      %p59 = por %p57, %p58
      %s60 = ssub.s32 %s21, %s33
      %s61 = ssub.s32 %s22, %s29
      %s62 = sor.u32 %s60, %s61
      %p63 = scmp.eq.s32.totalorder %s62, 0
      %s65 = sadd.s32 %s64, 1
      %s66 = scalar_select %p63, %s64, %s65
      %p69 = pneg %p63
      %p70 = scmp.eq.s32.totalorder %s14, 1
      %p71 = por %p69, %p70
      %p72 = scmp.ne.s32.totalorder %s64, %s67
      %p73 = scmp.eq.s32.totalorder %s14, 0
      %p74 = por %p72, %p73
      %p75 = scmp.ne.s32.totalorder %s64, %s67
      %p76 = scmp.eq.s32.totalorder %s19, 1
      %p77 = por %p75, %p76
      %p78 = scmp.ne.s32.totalorder %s67, %s68
      %p79 = scmp.eq.s32.totalorder %s19, 0
      %p80 = por %p78, %p79
      %p81 = scmp.ne.s32.totalorder %s67, %s68
      %p82 = scmp.eq.s32.totalorder %s20, 1
      %p83 = por %p81, %p82
      %p85 = scmp.ne.s32.totalorder %s68, %s84
      %p86 = scmp.eq.s32.totalorder %s20, 0
      %p87 = por %p85, %p86
      %s88 = ssub.s32 %s21, %s33
      %p89 = scmp.eq.s32.totalorder %s88, 0
      %s91 = sadd.s32 %s90, 1
      %s92 = scalar_select %p89, %s90, %s91
      %p95 = pneg %p89
      %p96 = scmp.eq.s32.totalorder %s14, 1
      %p97 = por %p95, %p96
      %p98 = scmp.ne.s32.totalorder %s90, %s93
      %p99 = scmp.eq.s32.totalorder %s14, 0
      %p100 = por %p98, %p99
      %p101 = scmp.ne.s32.totalorder %s90, %s93
      %p102 = scmp.eq.s32.totalorder %s19, 1
      %p103 = por %p101, %p102
      %p104 = scmp.ne.s32.totalorder %s93, %s94
      %p105 = scmp.eq.s32.totalorder %s19, 0
      %p106 = por %p104, %p105
      %p107 = scmp.ne.s32.totalorder %s93, %s94
      %p108 = scmp.eq.s32.totalorder %s20, 1
      %p109 = por %p107, %p108
      %p111 = scmp.ne.s32.totalorder %s94, %s110
      %p112 = scmp.eq.s32.totalorder %s20, 0
      %p113 = por %p111, %p112
      %s114 = ssub.s32 %s21, %s33
      %p115 = scmp.eq.s32.totalorder %s114, 0
      %s117 = sadd.s32 %s116, 1
      %s118 = scalar_select %p115, %s116, %s117
      %p121 = pneg %p115
      %p122 = scmp.eq.s32.totalorder %s14, 1
      %p123 = por %p121, %p122
      %p124 = scmp.ne.s32.totalorder %s116, %s119
      %p125 = scmp.eq.s32.totalorder %s14, 0
      %p126 = por %p124, %p125
      %p127 = scmp.ne.s32.totalorder %s116, %s119
      %p128 = scmp.eq.s32.totalorder %s19, 1
      %p129 = por %p127, %p128
      %p130 = scmp.ne.s32.totalorder %s119, %s120
      %p131 = scmp.eq.s32.totalorder %s19, 0
      %p132 = por %p130, %p131
      %p133 = scmp.ne.s32.totalorder %s119, %s120
      %p134 = scmp.eq.s32.totalorder %s20, 1
      %p135 = por %p133, %p134
      %p137 = scmp.ne.s32.totalorder %s120, %s136
      %p138 = scmp.eq.s32.totalorder %s20, 0
      %p139 = por %p137, %p138
      %s141 = sadd.s32 %s140, 1
      %p144 = scmp.eq.s32.totalorder %s14, 1
      %p145 = scmp.ne.s32.totalorder %s140, %s142
      %p146 = scmp.eq.s32.totalorder %s14, 0
      %p147 = por %p145, %p146
      %p148 = scmp.ne.s32.totalorder %s140, %s142
      %p149 = scmp.eq.s32.totalorder %s19, 1
      %p150 = por %p148, %p149
      %p151 = scmp.ne.s32.totalorder %s142, %s143
      %p152 = scmp.eq.s32.totalorder %s19, 0
      %p153 = por %p151, %p152
      %p154 = scmp.ne.s32.totalorder %s142, %s143
      %p155 = scmp.eq.s32.totalorder %s20, 1
      %p156 = por %p154, %p155
      %p158 = scmp.ne.s32.totalorder %s143, %s157
      %p159 = scmp.eq.s32.totalorder %s20, 0
      %p160 = por %p158, %p159
      %s161 = ssub.s32 %s21, %s33
      %s162 = ssub.s32 %s22, %s29
      %s163 = sor.u32 %s161, %s162
      %p164 = scmp.eq.s32.totalorder %s163, 0
      %s166 = sadd.s32 %s165, 1
      %s167 = scalar_select %p164, %s165, %s166
      %p170 = pneg %p164
      %p171 = scmp.eq.s32.totalorder %s14, 1
      %p172 = por %p170, %p171
      %p173 = scmp.ne.s32.totalorder %s165, %s168
      %p174 = scmp.eq.s32.totalorder %s14, 0
      %p175 = por %p173, %p174
      %p176 = scmp.ne.s32.totalorder %s165, %s168
      %p177 = scmp.eq.s32.totalorder %s19, 1
      %p178 = por %p176, %p177
      %p179 = scmp.ne.s32.totalorder %s168, %s169
      %p180 = scmp.eq.s32.totalorder %s19, 0
      %p181 = por %p179, %p180
      %p182 = scmp.ne.s32.totalorder %s168, %s169
      %p183 = scmp.eq.s32.totalorder %s20, 1
      %p184 = por %p182, %p183
      %p186 = scmp.ne.s32.totalorder %s169, %s185
      %p187 = scmp.eq.s32.totalorder %s20, 0
      %p188 = por %p186, %p187
      %p189 = scmp.le.s32.totalorder 1, %s14
      %p190 = scmp.lt.s32.totalorder %s14, 3
      %p191 = pnand %p189, %p190
      %p192 = pneg %p191
      // Predicated region
      $region9: #{tpu_custom_call.1} parent=5 // pred_check
        _
      $region10: #{tpu_custom_call.1} parent=5 // pred_check_branch
        %194 = sbr.rel (%p191) target = $region12
      $region11: #{tpu_custom_call.1} parent=5 // pred_region
        %s195 = ssub.s32 %s14, 1
        // Predicated region
        $region13: #{tpu_custom_call.1} parent=11 // pred_check
          %p196 = pneg %p153
        $region14: #{tpu_custom_call.1} parent=11 // pred_check_branch
          %198 = sbr.rel (%p196) target = $region16
        $region15: #{tpu_custom_call.1} parent=11 // pred_region
          _
        $region16: #{tpu_custom_call.1} parent=11 // pred_fallthru
          _
      $region12: #{tpu_custom_call.1} parent=5 // pred_fallthru
        _
      %p199 = scmp.lt.s32.totalorder %s14, 2
      // Predicated region
      $region17: #{tpu_custom_call.1} parent=5 // pred_check
        %p200 = pneg %p199
      $region18: #{tpu_custom_call.1} parent=5 // pred_check_branch
        %202 = sbr.rel (%p200) target = $region20
      $region19: #{tpu_custom_call.1} parent=5 // pred_region
        // Predicated region
        $region21: #{tpu_custom_call.1} parent=19 // pred_check
          %p203 = pneg %p46
        $region22: #{tpu_custom_call.1} parent=19 // pred_check_branch
          %205 = sbr.rel (%p203) target = $region24
        $region23: #{tpu_custom_call.1} parent=19 // pred_region
          %p206 = scmp.lt.s32.totalorder %s21, 1
          %s207 = scalar_select %p206, %s21, 1
          %s208 = smul.addr %s207, 4
          %s209 = smul.addr %s208, 8
          %s210 = scalar_lea.vmem %s0, %s209
        $region24: #{tpu_custom_call.1} parent=19 // pred_fallthru
          _
        // Predicated region
        $region25: #{tpu_custom_call.1} parent=19 // pred_check
          %p211 = pneg %p74
        $region26: #{tpu_custom_call.1} parent=19 // pred_check_branch
          %213 = sbr.rel (%p211) target = $region28
        $region27: #{tpu_custom_call.1} parent=19 // pred_region
          %s214 = smul.u32 4, %s22
          %p215 = scmp.lt.s32.totalorder %s21, 1
          %s216 = scalar_select %p215, %s21, 1
          %p217 = scmp.lt.s32.totalorder %s214, 3
          %s218 = scalar_select %p217, %s214, 3
          %s219 = smul.addr %s216, 4
          %s220 = sadd.s32 %s218, %s219
          %s221 = smul.addr %s220, 8
          %s222 = scalar_lea.vmem %s1, %s221
          %s223 = smul.u32 4, %s22
        $region28: #{tpu_custom_call.1} parent=19 // pred_fallthru
          _
        // Predicated region
        $region29: #{tpu_custom_call.1} parent=19 // pred_check
          %p224 = pneg %p100
        $region30: #{tpu_custom_call.1} parent=19 // pred_check_branch
          %226 = sbr.rel (%p224) target = $region32
        $region31: #{tpu_custom_call.1} parent=19 // pred_region
          %p227 = scmp.lt.s32.totalorder %s21, 1
          %s228 = scalar_select %p227, %s21, 1
          %s229 = smul.addr %s228, 4
          %s230 = smul.addr %s229, 8
          %s231 = scalar_lea.vmem %s2, %s230
        $region32: #{tpu_custom_call.1} parent=19 // pred_fallthru
          _
        // Predicated region
        $region33: #{tpu_custom_call.1} parent=19 // pred_check
          %p232 = pneg %p126
        $region34: #{tpu_custom_call.1} parent=19 // pred_check_branch
          %234 = sbr.rel (%p232) target = $region36
        $region35: #{tpu_custom_call.1} parent=19 // pred_region
          %p235 = scmp.lt.s32.totalorder %s21, 1
          %s236 = scalar_select %p235, %s21, 1
          %s237 = scalar_lea.vmem %s3, %s236
        $region36: #{tpu_custom_call.1} parent=19 // pred_fallthru
          _
      $region20: #{tpu_custom_call.1} parent=5 // pred_fallthru
        _
      %p238 = scmp.le.s32.totalorder 1, %s14
      %p239 = scmp.lt.s32.totalorder %s14, 3
      %p240 = pnand %p238, %p239
      %p241 = pneg %p240
      // Predicated region
      $region37: #{tpu_custom_call.1} parent=5 // pred_check
        _
      $region38: #{tpu_custom_call.1} parent=5 // pred_check_branch
        %243 = sbr.rel (%p240) target = $region40
      $region39: #{tpu_custom_call.1} parent=5 // pred_region
        %s244 = ssub.s32 %s14, 1
        %p245 = scmp.lt.s32.totalorder %s23, 1
        %s246 = scalar_select %p245, %s23, 1
        %s247 = smul.addr %s246, 4
        %s248 = smul.addr %s247, 8
        %s249 = scalar_lea.vmem %s0, %s248
        %p250 = pneg %p52
        %p251 = pneg %p49
        %s252 = smul.u32 4, %s24
        %p253 = scmp.lt.s32.totalorder %s23, 1
        %s254 = scalar_select %p253, %s23, 1
        %p255 = scmp.lt.s32.totalorder %s252, 3
        %s256 = scalar_select %p255, %s252, 3
        %s257 = smul.addr %s254, 4
        %s258 = sadd.s32 %s256, %s257
        %s259 = smul.addr %s258, 8
        %s260 = scalar_lea.vmem %s1, %s259
        %p261 = pneg %p80
        %p262 = pneg %p77
        %p263 = scmp.lt.s32.totalorder %s23, 1
        %s264 = scalar_select %p263, %s23, 1
        %s265 = smul.addr %s264, 4
        %s266 = smul.addr %s265, 8
        %s267 = scalar_lea.vmem %s2, %s266
        %p268 = pneg %p106
        %p269 = pneg %p103
        %p270 = scmp.lt.s32.totalorder %s23, 1
        %s271 = scalar_select %p270, %s23, 1
        %s272 = scalar_lea.vmem %s3, %s271
        %p273 = pneg %p132
        %p274 = pneg %p129
        %p275 = pneg %p153
        %p276 = pneg %p150
        %p277 = pneg %p181
        %p278 = pneg %p178
        %s279 = sand.u32 %s168, 1
        %s280 = scalar_lea.sflag [#allocation3], %s279
        %s281 = sand.u32 %s168, 1
        %s282 = smul.addr %s281, 32
        %s283 = scalar_lea.vmem [#allocation2], %s282
        %p284 = scmp.lt.s32.totalorder %s23, 1
        %s285 = scalar_select %p284, %s23, 1
        %s286 = smul.addr %s285, 4
        %s287 = smul.addr %s286, 8
        %s288 = scalar_lea.vmem %s0, %s287
        %s289 = smul.u32 4, %s24
        %p290 = scmp.lt.s32.totalorder %s23, 1
        %s291 = scalar_select %p290, %s23, 1
        %p292 = scmp.lt.s32.totalorder %s289, 3
        %s293 = scalar_select %p292, %s289, 3
        %s294 = smul.addr %s291, 4
        %s295 = sadd.s32 %s293, %s294
        %s296 = smul.addr %s295, 8
        %s297 = scalar_lea.vmem %s1, %s296
        %s298 = smul.u32 4, %s24
        %p299 = scmp.lt.s32.totalorder %s23, 1
        %s300 = scalar_select %p299, %s23, 1
        %s301 = smul.addr %s300, 4
        %s302 = smul.addr %s301, 8
        %s303 = scalar_lea.vmem %s2, %s302
        %p304 = scmp.lt.s32.totalorder %s23, 1
        %s305 = scalar_select %p304, %s23, 1
        %s306 = scalar_lea.vmem %s3, %s305
        %s307 = smul.u32 4, %s24
        %v308 = vld [vmem:[%s288] sm:$0xff]
        %v309 = vld [vmem:[%s288 + $0x8] sm:$0xff]
        %v310 = vld [vmem:[%s288 + $0x10] sm:$0xff]
        %v311 = vld [vmem:[%s288 + $0x18] sm:$0xff]
        %s312 = smul.u32 %s24, 32
        %s313 = scalar_lea.vmem %s288, %s312
        %v314 = vld [vmem:[%s313] sm:$0xff]
        %v315 = vld [vmem:[%s313 + $0x8] sm:$0xff]
        %v316 = vld [vmem:[%s313 + $0x10] sm:$0xff]
        %v317 = vld [vmem:[%s313 + $0x18] sm:$0xff]
        %vm318 = vcmask 64512
        %v320 = vsel %vm318, %v314, 0
        %v323 = vsel %vm318, %v315, 0
        %v326 = vsel %vm318, %v316, 0
        %v329 = vsel %vm318, %v317, 0
        %v332 = vsel %vm318, %v308, 0
        %v335 = vsel %vm318, %v309, 0
        %v338 = vsel %vm318, %v310, 0
        %v341 = vsel %vm318, %v311, 0
        %343 = vmatpush.xpose.msra.mxu0 0.0
        %344 = vmatpush.xpose.msra.mxu0 0.0
        %345 = vmatpush.xpose.msra.mxu0 0.0
        %346 = vmatpush.xpose.msra.mxu0 0.0
        %347 = vmatpush.xpose.msra.mxu0 0.0
        %348 = vmatpush.xpose.msra.mxu0 0.0
        %349 = vmatpush.xpose.msra.mxu0 0.0
        %350 = vmatpush.xpose.msra.mxu0 0.0
        %351 = vmatpush.xpose.msra.mxu0 0.0
        %352 = vmatpush.xpose.msra.mxu0 0.0
        %353 = vmatpush.xpose.msra.mxu0 0.0
        %354 = vmatpush.xpose.msra.mxu0 0.0
        %355 = vmatpush.xpose.msra.mxu0 %v341
        %356 = vmatpush.xpose.msra.mxu0 %v338
        %357 = vmatpush.xpose.msra.mxu0 %v335
        %358 = vmatpush.xpose.msra.mxu0 %v332
        %359 = vmatmul.f32.gmra.mxu0 %v320
        %v360 = vpop.f32.mrf.mxu0
        %v361 = vadd.f32 0.0, %v360
        %362 = vmatmul.f32.gmra.mxu0 %v323
        %v363 = vpop.f32.mrf.mxu0
        %v364 = vadd.f32 0.0, %v363
        %365 = vmatmul.f32.gmra.mxu0 %v326
        %v366 = vpop.f32.mrf.mxu0
        %v367 = vadd.f32 0.0, %v366
        %368 = vmatmul.f32.gmra.mxu0 %v329
        %v369 = vpop.f32.mrf.mxu0
        %v370 = vadd.f32 0.0, %v369
        %371 = vdwg.mxu0
        %v372 = vld [vmem:[%s306] sm:$0x1]
        %v373 = vmul.f32 %v361, 2.0
        %v374 = vmul.f32 %v364, 2.0
        %v375 = vmul.f32 %v367, 2.0
        %v376 = vmul.f32 %v370, 2.0
        %v378 = vperm.slane %v372, 0
        %v380 = vsub.f32 %v378, %v373
        %v381 = vsub.f32 %v378, %v374
        %v382 = vsub.f32 %v378, %v375
        %v383 = vsub.f32 %v378, %v376
        %v384 = vlaneseq
        %v385 = vand.u32 %v384, 127
        %v390 = vand.u32 %v380, 4294967264
        %v391 = vand.u32 %v381, 4294967264
        %v392 = vand.u32 %v382, 4294967264
        %v393 = vand.u32 %v383, 4294967264
        %v394 = vor.u32 %v390, %v385
        %v395 = vor.u32 %v391, %v385
        %v396 = vor.u32 %v392, %v385
        %v397 = vor.u32 %v393, %v385
        %vm402 = vcmask 261120
        %v403 = vsel %vm402, %v394, inf
        %404 = vmin.xlane.f32.xlu0 %v403
        %v405 = vpop.xlane.xlu0 %404
        %v406 = vsel %vm402, %v395, inf
        %407 = vmin.xlane.f32.xlu0 %v406
        %v408 = vpop.xlane.xlu0 %407
        %v409 = vsel %vm402, %v396, inf
        %410 = vmin.xlane.f32.xlu0 %v409
        %v411 = vpop.xlane.xlu0 %410
        %v412 = vsel %vm402, %v397, inf
        %413 = vmin.xlane.f32.xlu0 %v412
        %v414 = vpop.xlane.xlu0 %413
        %vm415 = vcmp.eq.f32.partialorder %v394, %v405
        %vm416 = vcmp.eq.f32.partialorder %v395, %v408
        %vm417 = vcmp.eq.f32.partialorder %v396, %v411
        %vm418 = vcmp.eq.f32.partialorder %v397, %v414
        %v419 = vsel %vm415, inf, %v394
        %v420 = vsel %vm416, inf, %v395
        %v421 = vsel %vm417, inf, %v396
        %v422 = vsel %vm418, inf, %v397
        %v423 = vsel %vm415, 1, 0
        %v424 = vsel %vm416, 1, 0
        %v425 = vsel %vm417, 1, 0
        %v426 = vsel %vm418, 1, 0
        %v427 = vcvt.s32.f32 %v423
        %v428 = vcvt.s32.f32 %v424
        %v429 = vcvt.s32.f32 %v425
        %v430 = vcvt.s32.f32 %v426
        %v431 = vsel %vm402, %v419, inf
        %432 = vmin.xlane.f32.xlu0 %v431
        %v433 = vpop.xlane.xlu0 %432
        %v434 = vsel %vm402, %v420, inf
        %435 = vmin.xlane.f32.xlu0 %v434
        %v436 = vpop.xlane.xlu0 %435
        %v437 = vsel %vm402, %v421, inf
        %438 = vmin.xlane.f32.xlu0 %v437
        %v439 = vpop.xlane.xlu0 %438
        %v440 = vsel %vm402, %v422, inf
        %441 = vmin.xlane.f32.xlu0 %v440
        %v442 = vpop.xlane.xlu0 %441
        %vm443 = vcmp.eq.f32.partialorder %v419, %v433
        %vm444 = vcmp.eq.f32.partialorder %v420, %v436
        %vm445 = vcmp.eq.f32.partialorder %v421, %v439
        %vm446 = vcmp.eq.f32.partialorder %v422, %v442
        %v447 = vsel %vm443, inf, %v419
        %v448 = vsel %vm444, inf, %v420
        %v449 = vsel %vm445, inf, %v421
        %v450 = vsel %vm446, inf, %v422
        %v451 = vsel %vm443, 1, 0
        %v452 = vsel %vm444, 1, 0
        %v453 = vsel %vm445, 1, 0
        %v454 = vsel %vm446, 1, 0
        %v455 = vcvt.s32.f32 %v451
        %v456 = vcvt.s32.f32 %v452
        %v457 = vcvt.s32.f32 %v453
        %v458 = vcvt.s32.f32 %v454
        %v459 = vsel %vm402, %v447, inf
        %460 = vmin.xlane.f32.xlu0 %v459
        %v461 = vpop.xlane.xlu0 %460
        %v462 = vsel %vm402, %v448, inf
        %463 = vmin.xlane.f32.xlu0 %v462
        %v464 = vpop.xlane.xlu0 %463
        %v465 = vsel %vm402, %v449, inf
        %466 = vmin.xlane.f32.xlu0 %v465
        %v467 = vpop.xlane.xlu0 %466
        %v468 = vsel %vm402, %v450, inf
        %469 = vmin.xlane.f32.xlu0 %v468
        %v470 = vpop.xlane.xlu0 %469
        %vm471 = vcmp.eq.f32.partialorder %v447, %v461
        %vm472 = vcmp.eq.f32.partialorder %v448, %v464
        %vm473 = vcmp.eq.f32.partialorder %v449, %v467
        %vm474 = vcmp.eq.f32.partialorder %v450, %v470
        %v475 = vsel %vm471, inf, %v447
        %v476 = vsel %vm472, inf, %v448
        %v477 = vsel %vm473, inf, %v449
        %v478 = vsel %vm474, inf, %v450
        %v479 = vsel %vm471, 1, 0
        %v480 = vsel %vm472, 1, 0
        %v481 = vsel %vm473, 1, 0
        %v482 = vsel %vm474, 1, 0
        %v483 = vcvt.s32.f32 %v479
        %v484 = vcvt.s32.f32 %v480
        %v485 = vcvt.s32.f32 %v481
        %v486 = vcvt.s32.f32 %v482
        %v487 = vsel %vm402, %v475, inf
        %488 = vmin.xlane.f32.xlu0 %v487
        %v489 = vpop.xlane.xlu0 %488
        %v490 = vsel %vm402, %v476, inf
        %491 = vmin.xlane.f32.xlu0 %v490
        %v492 = vpop.xlane.xlu0 %491
        %v493 = vsel %vm402, %v477, inf
        %494 = vmin.xlane.f32.xlu0 %v493
        %v495 = vpop.xlane.xlu0 %494
        %v496 = vsel %vm402, %v478, inf
        %497 = vmin.xlane.f32.xlu0 %v496
        %v498 = vpop.xlane.xlu0 %497
        %vm499 = vcmp.eq.f32.partialorder %v475, %v489
        %vm500 = vcmp.eq.f32.partialorder %v476, %v492
        %vm501 = vcmp.eq.f32.partialorder %v477, %v495
        %vm502 = vcmp.eq.f32.partialorder %v478, %v498
        %v503 = vsel %vm499, 1, 0
        %v504 = vsel %vm500, 1, 0
        %v505 = vsel %vm501, 1, 0
        %v506 = vsel %vm502, 1, 0
        %v507 = vcvt.s32.f32 %v503
        %v508 = vcvt.s32.f32 %v504
        %v509 = vcvt.s32.f32 %v505
        %v510 = vcvt.s32.f32 %v506
        %v511 = vld [vmem:[%s303] sm:$0xff]
        %v512 = vld [vmem:[%s303 + $0x8] sm:$0xff]
        %v513 = vld [vmem:[%s303 + $0x10] sm:$0xff]
        %v514 = vld [vmem:[%s303 + $0x18] sm:$0xff]
        %v515 = vld [vmem:[%s297] sm:$0xff]
        %v516 = vld [vmem:[%s297 + $0x8] sm:$0xff]
        %v517 = vld [vmem:[%s297 + $0x10] sm:$0xff]
        %v518 = vld [vmem:[%s297 + $0x18] sm:$0xff]
        %v520 = vsel %vm402, %v427, 0
        %v523 = vsel %vm402, %v428, 0
        %v526 = vsel %vm402, %v429, 0
        %v529 = vsel %vm402, %v430, 0
        %v532 = vsel %vm402, %v455, 0
        %v535 = vsel %vm402, %v456, 0
        %v538 = vsel %vm402, %v457, 0
        %v541 = vsel %vm402, %v458, 0
        %v544 = vsel %vm402, %v483, 0
        %v547 = vsel %vm402, %v484, 0
        %v550 = vsel %vm402, %v485, 0
        %v553 = vsel %vm402, %v486, 0
        %v556 = vsel %vm402, %v507, 0
        %v559 = vsel %vm402, %v508, 0
        %v562 = vsel %vm402, %v509, 0
        %v565 = vsel %vm402, %v510, 0
        %567 = vmatpush.msra.mxu0 0.0
        %568 = vmatpush.msra.mxu0 0.0
        %569 = vmatpush.msra.mxu0 0.0
        %570 = vmatpush.msra.mxu0 0.0
        %571 = vmatpush.msra.mxu0 0.0
        %572 = vmatpush.msra.mxu0 0.0
        %573 = vmatpush.msra.mxu0 0.0
        %574 = vmatpush.msra.mxu0 0.0
        %575 = vmatpush.msra.mxu0 0.0
        %576 = vmatpush.msra.mxu0 0.0
        %577 = vmatpush.msra.mxu0 0.0
        %578 = vmatpush.msra.mxu0 0.0
        %579 = vmatpush.msra.mxu0 %v514
        %580 = vmatpush.msra.mxu0 %v513
        %581 = vmatpush.msra.mxu0 %v512
        %582 = vmatpush.msra.mxu0 %v511
        %583 = vmatmul.f32.gmra.mxu0 %v520
        %v584 = vpop.f32.mrf.mxu0
        %v585 = vadd.f32 %v515, %v584
        %586 = vmatmul.f32.gmra.mxu0 %v523
        %v587 = vpop.f32.mrf.mxu0
        %v588 = vadd.f32 %v516, %v587
        %589 = vmatmul.f32.gmra.mxu0 %v526
        %v590 = vpop.f32.mrf.mxu0
        %v591 = vadd.f32 %v517, %v590
        %592 = vmatmul.f32.gmra.mxu0 %v529
        %v593 = vpop.f32.mrf.mxu0
        %v594 = vadd.f32 %v518, %v593
        %595 = vmatmul.f32.gmra.mxu0 %v532
        %v596 = vpop.f32.mrf.mxu0
        %v597 = vadd.f32 %v515, %v596
        %598 = vmatmul.f32.gmra.mxu0 %v535
        %v599 = vpop.f32.mrf.mxu0
        %v600 = vadd.f32 %v516, %v599
        %601 = vmatmul.f32.gmra.mxu0 %v538
        %v602 = vpop.f32.mrf.mxu0
        %v603 = vadd.f32 %v517, %v602
        %604 = vmatmul.f32.gmra.mxu0 %v541
        %v605 = vpop.f32.mrf.mxu0
        %v606 = vadd.f32 %v518, %v605
        %607 = vmatmul.f32.gmra.mxu0 %v544
        %v608 = vpop.f32.mrf.mxu0
        %v609 = vadd.f32 %v515, %v608
        %610 = vmatmul.f32.gmra.mxu0 %v547
        %v611 = vpop.f32.mrf.mxu0
        %v612 = vadd.f32 %v516, %v611
        %613 = vmatmul.f32.gmra.mxu0 %v550
        %v614 = vpop.f32.mrf.mxu0
        %v615 = vadd.f32 %v517, %v614
        %616 = vmatmul.f32.gmra.mxu0 %v553
        %v617 = vpop.f32.mrf.mxu0
        %v618 = vadd.f32 %v518, %v617
        %619 = vmatmul.f32.gmra.mxu0 %v556
        %v620 = vpop.f32.mrf.mxu0
        %v621 = vadd.f32 %v515, %v620
        %622 = vmatmul.f32.gmra.mxu0 %v559
        %v623 = vpop.f32.mrf.mxu0
        %v624 = vadd.f32 %v516, %v623
        %625 = vmatmul.f32.gmra.mxu0 %v562
        %v626 = vpop.f32.mrf.mxu0
        %v627 = vadd.f32 %v517, %v626
        %628 = vmatmul.f32.gmra.mxu0 %v565
        %v629 = vpop.f32.mrf.mxu0
        %v630 = vadd.f32 %v518, %v629
        %631 = vdwg.mxu0
        %v632 = vmax.f32 %v585, 0.0
        %v633 = vmax.f32 %v588, 0.0
        %v634 = vmax.f32 %v591, 0.0
        %v635 = vmax.f32 %v594, 0.0
        %v636 = vmax.f32 %v597, 0.0
        %v637 = vmax.f32 %v600, 0.0
        %v638 = vmax.f32 %v603, 0.0
        %v639 = vmax.f32 %v606, 0.0
        %v640 = vmax.f32 %v609, 0.0
        %v641 = vmax.f32 %v612, 0.0
        %v642 = vmax.f32 %v615, 0.0
        %v643 = vmax.f32 %v618, 0.0
        %v644 = vmax.f32 %v621, 0.0
        %v645 = vmax.f32 %v624, 0.0
        %v646 = vmax.f32 %v627, 0.0
        %v647 = vmax.f32 %v630, 0.0
        %v648 = vld [vmem:[%s4] sm:$0xff]
        %v649 = vld [vmem:[%s4 + $0x8] sm:$0xff]
        %v650 = vld [vmem:[%s4 + $0x10] sm:$0x1]
        %v651 = vperm.slane %v650, 0
        %vm652 = vcmask 130048
        %v654 = vsel %vm652, %v632, 0
        %v657 = vsel %vm652, %v633, 0
        %v660 = vsel %vm652, %v634, 0
        %v663 = vsel %vm652, %v635, 0
        %v666 = vsel %vm652, %v636, 0
        %v669 = vsel %vm652, %v637, 0
        %v672 = vsel %vm652, %v638, 0
        %v675 = vsel %vm652, %v639, 0
        %v678 = vsel %vm652, %v640, 0
        %v681 = vsel %vm652, %v641, 0
        %v684 = vsel %vm652, %v642, 0
        %v687 = vsel %vm652, %v643, 0
        %v690 = vsel %vm652, %v644, 0
        %v693 = vsel %vm652, %v645, 0
        %v696 = vsel %vm652, %v646, 0
        %v699 = vsel %vm652, %v647, 0
        %701 = vmatpush.msra.mxu0 0.0
        %702 = vmatpush.msra.mxu0 0.0
        %703 = vmatpush.msra.mxu0 0.0
        %704 = vmatpush.msra.mxu0 0.0
        %705 = vmatpush.msra.mxu0 0.0
        %706 = vmatpush.msra.mxu0 0.0
        %707 = vmatpush.msra.mxu0 0.0
        %708 = vmatpush.msra.mxu0 0.0
        %709 = vmatpush.msra.mxu0 0.0
        %710 = vmatpush.msra.mxu0 0.0
        %711 = vmatpush.msra.mxu0 0.0
        %712 = vmatpush.msra.mxu0 0.0
        %713 = vmatpush.msra.mxu0 0.0
        %714 = vmatpush.msra.mxu0 0.0
        %715 = vmatpush.msra.mxu0 %v649
        %716 = vmatpush.msra.mxu0 %v648
        %717 = vmatmul.f32.gmra.mxu0 %v654
        %v718 = vpop.f32.mrf.mxu0
        %v719 = vadd.f32 %v651, %v718
        %720 = vmatmul.f32.gmra.mxu0 %v657
        %v721 = vpop.f32.mrf.mxu0
        %v722 = vadd.f32 %v651, %v721
        %723 = vmatmul.f32.gmra.mxu0 %v660
        %v724 = vpop.f32.mrf.mxu0
        %v725 = vadd.f32 %v651, %v724
        %726 = vmatmul.f32.gmra.mxu0 %v663
        %v727 = vpop.f32.mrf.mxu0
        %v728 = vadd.f32 %v651, %v727
        %729 = vmatmul.f32.gmra.mxu0 %v666
        %v730 = vpop.f32.mrf.mxu0
        %v731 = vadd.f32 %v651, %v730
        %732 = vmatmul.f32.gmra.mxu0 %v669
        %v733 = vpop.f32.mrf.mxu0
        %v734 = vadd.f32 %v651, %v733
        %735 = vmatmul.f32.gmra.mxu0 %v672
        %v736 = vpop.f32.mrf.mxu0
        %v737 = vadd.f32 %v651, %v736
        %738 = vmatmul.f32.gmra.mxu0 %v675
        %v739 = vpop.f32.mrf.mxu0
        %v740 = vadd.f32 %v651, %v739
        %741 = vmatmul.f32.gmra.mxu0 %v678
        %v742 = vpop.f32.mrf.mxu0
        %v743 = vadd.f32 %v651, %v742
        %744 = vmatmul.f32.gmra.mxu0 %v681
        %v745 = vpop.f32.mrf.mxu0
        %v746 = vadd.f32 %v651, %v745
        %747 = vmatmul.f32.gmra.mxu0 %v684
        %v748 = vpop.f32.mrf.mxu0
        %v749 = vadd.f32 %v651, %v748
        %750 = vmatmul.f32.gmra.mxu0 %v687
        %v751 = vpop.f32.mrf.mxu0
        %v752 = vadd.f32 %v651, %v751
        %753 = vmatmul.f32.gmra.mxu0 %v690
        %v754 = vpop.f32.mrf.mxu0
        %v755 = vadd.f32 %v651, %v754
        %756 = vmatmul.f32.gmra.mxu0 %v693
        %v757 = vpop.f32.mrf.mxu0
        %v758 = vadd.f32 %v651, %v757
        %759 = vmatmul.f32.gmra.mxu0 %v696
        %v760 = vpop.f32.mrf.mxu0
        %v761 = vadd.f32 %v651, %v760
        %762 = vmatmul.f32.gmra.mxu0 %v699
        %v763 = vpop.f32.mrf.mxu0
        %v764 = vadd.f32 %v651, %v763
        %765 = vdwg.mxu0
        %v766 = vsel %vm652, %v719, -inf
        %767 = vmax.xlane.f32.xlu0 %v766
        %v768 = vpop.xlane.xlu0 %767
        %v769 = vsel %vm652, %v722, -inf
        %770 = vmax.xlane.f32.xlu0 %v769
        %v771 = vpop.xlane.xlu0 %770
        %v772 = vsel %vm652, %v725, -inf
        %773 = vmax.xlane.f32.xlu0 %v772
        %v774 = vpop.xlane.xlu0 %773
        %v775 = vsel %vm652, %v728, -inf
        %776 = vmax.xlane.f32.xlu0 %v775
        %v777 = vpop.xlane.xlu0 %776
        %v778 = vsel %vm652, %v731, -inf
        %779 = vmax.xlane.f32.xlu0 %v778
        %v780 = vpop.xlane.xlu0 %779
        %v781 = vsel %vm652, %v734, -inf
        %782 = vmax.xlane.f32.xlu0 %v781
        %v783 = vpop.xlane.xlu0 %782
        %v784 = vsel %vm652, %v737, -inf
        %785 = vmax.xlane.f32.xlu0 %v784
        %v786 = vpop.xlane.xlu0 %785
        %v787 = vsel %vm652, %v740, -inf
        %788 = vmax.xlane.f32.xlu0 %v787
        %v789 = vpop.xlane.xlu0 %788
        %v790 = vsel %vm652, %v743, -inf
        %791 = vmax.xlane.f32.xlu0 %v790
        %v792 = vpop.xlane.xlu0 %791
        %v793 = vsel %vm652, %v746, -inf
        %794 = vmax.xlane.f32.xlu0 %v793
        %v795 = vpop.xlane.xlu0 %794
        %v796 = vsel %vm652, %v749, -inf
        %797 = vmax.xlane.f32.xlu0 %v796
        %v798 = vpop.xlane.xlu0 %797
        %v799 = vsel %vm652, %v752, -inf
        %800 = vmax.xlane.f32.xlu0 %v799
        %v801 = vpop.xlane.xlu0 %800
        %v802 = vsel %vm652, %v755, -inf
        %803 = vmax.xlane.f32.xlu0 %v802
        %v804 = vpop.xlane.xlu0 %803
        %v805 = vsel %vm652, %v758, -inf
        %806 = vmax.xlane.f32.xlu0 %v805
        %v807 = vpop.xlane.xlu0 %806
        %v808 = vsel %vm652, %v761, -inf
        %809 = vmax.xlane.f32.xlu0 %v808
        %v810 = vpop.xlane.xlu0 %809
        %v811 = vsel %vm652, %v764, -inf
        %812 = vmax.xlane.f32.xlu0 %v811
        %v813 = vpop.xlane.xlu0 %812
        %v814 = vsub.f32 %v719, %v768
        %v815 = vsub.f32 %v722, %v771
        %v816 = vsub.f32 %v725, %v774
        %v817 = vsub.f32 %v728, %v777
        %v818 = vsub.f32 %v731, %v780
        %v819 = vsub.f32 %v734, %v783
        %v820 = vsub.f32 %v737, %v786
        %v821 = vsub.f32 %v740, %v789
        %v822 = vsub.f32 %v743, %v792
        %v823 = vsub.f32 %v746, %v795
        %v824 = vsub.f32 %v749, %v798
        %v825 = vsub.f32 %v752, %v801
        %v826 = vsub.f32 %v755, %v804
        %v827 = vsub.f32 %v758, %v807
        %v828 = vsub.f32 %v761, %v810
        %v829 = vsub.f32 %v764, %v813
        %v830 = vmul.f32 %v814, 1.442695
        %v831 = vpow.pop %v830
        %v832 = vmul.f32 %v815, 1.442695
        %v833 = vpow.pop %v832
        %v834 = vmul.f32 %v816, 1.442695
        %v835 = vpow.pop %v834
        %v836 = vmul.f32 %v817, 1.442695
        %v837 = vpow.pop %v836
        %v838 = vmul.f32 %v818, 1.442695
        %v839 = vpow.pop %v838
        %v840 = vmul.f32 %v819, 1.442695
        %v841 = vpow.pop %v840
        %v842 = vmul.f32 %v820, 1.442695
        %v843 = vpow.pop %v842
        %v844 = vmul.f32 %v821, 1.442695
        %v845 = vpow.pop %v844
        %v846 = vmul.f32 %v822, 1.442695
        %v847 = vpow.pop %v846
        %v848 = vmul.f32 %v823, 1.442695
        %v849 = vpow.pop %v848
        %v850 = vmul.f32 %v824, 1.442695
        %v851 = vpow.pop %v850
        %v852 = vmul.f32 %v825, 1.442695
        %v853 = vpow.pop %v852
        %v854 = vmul.f32 %v826, 1.442695
        %v855 = vpow.pop %v854
        %v856 = vmul.f32 %v827, 1.442695
        %v857 = vpow.pop %v856
        %v858 = vmul.f32 %v828, 1.442695
        %v859 = vpow.pop %v858
        %v860 = vmul.f32 %v829, 1.442695
        %v861 = vpow.pop %v860
        %v862 = vsel %vm652, %v831, 0.0
        %863 = vadd.xlane.f32.xlu0 %v862
        %v864 = vpop.xlane.xlu0 %863
        %v865 = vsel %vm652, %v833, 0.0
        %866 = vadd.xlane.f32.xlu0 %v865
        %v867 = vpop.xlane.xlu0 %866
        %v868 = vsel %vm652, %v835, 0.0
        %869 = vadd.xlane.f32.xlu0 %v868
        %v870 = vpop.xlane.xlu0 %869
        %v871 = vsel %vm652, %v837, 0.0
        %872 = vadd.xlane.f32.xlu0 %v871
        %v873 = vpop.xlane.xlu0 %872
        %v874 = vsel %vm652, %v839, 0.0
        %875 = vadd.xlane.f32.xlu0 %v874
        %v876 = vpop.xlane.xlu0 %875
        %v877 = vsel %vm652, %v841, 0.0
        %878 = vadd.xlane.f32.xlu0 %v877
        %v879 = vpop.xlane.xlu0 %878
        %v880 = vsel %vm652, %v843, 0.0
        %881 = vadd.xlane.f32.xlu0 %v880
        %v882 = vpop.xlane.xlu0 %881
        %v883 = vsel %vm652, %v845, 0.0
        %884 = vadd.xlane.f32.xlu0 %v883
        %v885 = vpop.xlane.xlu0 %884
        %v886 = vsel %vm652, %v847, 0.0
        %887 = vadd.xlane.f32.xlu0 %v886
        %v888 = vpop.xlane.xlu0 %887
        %v889 = vsel %vm652, %v849, 0.0
        %890 = vadd.xlane.f32.xlu0 %v889
        %v891 = vpop.xlane.xlu0 %890
        %v892 = vsel %vm652, %v851, 0.0
        %893 = vadd.xlane.f32.xlu0 %v892
        %v894 = vpop.xlane.xlu0 %893
        %v895 = vsel %vm652, %v853, 0.0
        %896 = vadd.xlane.f32.xlu0 %v895
        %v897 = vpop.xlane.xlu0 %896
        %v898 = vsel %vm652, %v855, 0.0
        %899 = vadd.xlane.f32.xlu0 %v898
        %v900 = vpop.xlane.xlu0 %899
        %v901 = vsel %vm652, %v857, 0.0
        %902 = vadd.xlane.f32.xlu0 %v901
        %v903 = vpop.xlane.xlu0 %902
        %v904 = vsel %vm652, %v859, 0.0
        %905 = vadd.xlane.f32.xlu0 %v904
        %v906 = vpop.xlane.xlu0 %905
        %v907 = vsel %vm652, %v861, 0.0
        %908 = vadd.xlane.f32.xlu0 %v907
        %v909 = vpop.xlane.xlu0 %908
        %v910 = vlog2.pop %v864
        %v911 = vmul.f32 %v910, 0.6931472
        %v912 = vlog2.pop %v867
        %v913 = vmul.f32 %v912, 0.6931472
        %v914 = vlog2.pop %v870
        %v915 = vmul.f32 %v914, 0.6931472
        %v916 = vlog2.pop %v873
        %v917 = vmul.f32 %v916, 0.6931472
        %v918 = vlog2.pop %v876
        %v919 = vmul.f32 %v918, 0.6931472
        %v920 = vlog2.pop %v879
        %v921 = vmul.f32 %v920, 0.6931472
        %v922 = vlog2.pop %v882
        %v923 = vmul.f32 %v922, 0.6931472
        %v924 = vlog2.pop %v885
        %v925 = vmul.f32 %v924, 0.6931472
        %v926 = vlog2.pop %v888
        %v927 = vmul.f32 %v926, 0.6931472
        %v928 = vlog2.pop %v891
        %v929 = vmul.f32 %v928, 0.6931472
        %v930 = vlog2.pop %v894
        %v931 = vmul.f32 %v930, 0.6931472
        %v932 = vlog2.pop %v897
        %v933 = vmul.f32 %v932, 0.6931472
        %v934 = vlog2.pop %v900
        %v935 = vmul.f32 %v934, 0.6931472
        %v936 = vlog2.pop %v903
        %v937 = vmul.f32 %v936, 0.6931472
        %v938 = vlog2.pop %v906
        %v939 = vmul.f32 %v938, 0.6931472
        %v940 = vlog2.pop %v909
        %v941 = vmul.f32 %v940, 0.6931472
        %v942 = vsub.f32 %v814, %v911
        %v943 = vsub.f32 %v815, %v913
        %v944 = vsub.f32 %v816, %v915
        %v945 = vsub.f32 %v817, %v917
        %v946 = vsub.f32 %v818, %v919
        %v947 = vsub.f32 %v819, %v921
        %v948 = vsub.f32 %v820, %v923
        %v949 = vsub.f32 %v821, %v925
        %v950 = vsub.f32 %v822, %v927
        %v951 = vsub.f32 %v823, %v929
        %v952 = vsub.f32 %v824, %v931
        %v953 = vsub.f32 %v825, %v933
        %v954 = vsub.f32 %v826, %v935
        %v955 = vsub.f32 %v827, %v937
        %v956 = vsub.f32 %v828, %v939
        %v957 = vsub.f32 %v829, %v941
        %v958 = vmax.f32 %v942, %v946
        %v959 = vmax.f32 %v943, %v947
        %v960 = vmax.f32 %v944, %v948
        %v961 = vmax.f32 %v945, %v949
        %v962 = vmax.f32 %v958, %v950
        %v963 = vmax.f32 %v959, %v951
        %v964 = vmax.f32 %v960, %v952
        %v965 = vmax.f32 %v961, %v953
        %v966 = vmax.f32 %v962, %v954
        %v967 = vmax.f32 %v963, %v955
        %v968 = vmax.f32 %v964, %v956
        %v969 = vmax.f32 %v965, %v957
        %v970 = vld [vmem:[%s4 + $0x18] sm:$0xff]
        %v971 = vld [vmem:[%s4 + $0x20] sm:$0xff]
        %v972 = vld [vmem:[%s4 + $0x28] sm:$0x1]
        %v973 = vperm.slane %v972, 0
        %v975 = vsel %vm652, %v966, 0
        %v978 = vsel %vm652, %v967, 0
        %v981 = vsel %vm652, %v968, 0
        %v984 = vsel %vm652, %v969, 0
        %986 = vmatpush.msra.mxu0 0.0
        %987 = vmatpush.msra.mxu0 0.0
        %988 = vmatpush.msra.mxu0 0.0
        %989 = vmatpush.msra.mxu0 0.0
        %990 = vmatpush.msra.mxu0 0.0
        %991 = vmatpush.msra.mxu0 0.0
        %992 = vmatpush.msra.mxu0 0.0
        %993 = vmatpush.msra.mxu0 0.0
        %994 = vmatpush.msra.mxu0 0.0
        %995 = vmatpush.msra.mxu0 0.0
        %996 = vmatpush.msra.mxu0 0.0
        %997 = vmatpush.msra.mxu0 0.0
        %998 = vmatpush.msra.mxu0 0.0
        %999 = vmatpush.msra.mxu0 0.0
        %1000 = vmatpush.msra.mxu0 %v971
        %1001 = vmatpush.msra.mxu0 %v970
        %1002 = vmatmul.f32.gmra.mxu0 %v975
        %v1003 = vpop.f32.mrf.mxu0
        %v1004 = vadd.f32 %v973, %v1003
        %1005 = vmatmul.f32.gmra.mxu0 %v978
        %v1006 = vpop.f32.mrf.mxu0
        %v1007 = vadd.f32 %v973, %v1006
        %1008 = vmatmul.f32.gmra.mxu0 %v981
        %v1009 = vpop.f32.mrf.mxu0
        %v1010 = vadd.f32 %v973, %v1009
        %1011 = vmatmul.f32.gmra.mxu0 %v984
        %v1012 = vpop.f32.mrf.mxu0
        %v1013 = vadd.f32 %v973, %v1012
        %1014 = vdwg.mxu0
        %1015 = vmax.xlane.f32.xlu0 %v1004
        %v1016 = vpop.xlane.xlu0 %1015
        %1017 = vmax.xlane.f32.xlu0 %v1007
        %v1018 = vpop.xlane.xlu0 %1017
        %1019 = vmax.xlane.f32.xlu0 %v1010
        %v1020 = vpop.xlane.xlu0 %1019
        %1021 = vmax.xlane.f32.xlu0 %v1013
        %v1022 = vpop.xlane.xlu0 %1021
        %v1023 = vsub.f32 %v1004, %v1016
        %v1024 = vsub.f32 %v1007, %v1018
        %v1025 = vsub.f32 %v1010, %v1020
        %v1026 = vsub.f32 %v1013, %v1022
        %v1027 = vmul.f32 %v1023, 1.442695
        %v1028 = vpow.pop %v1027
        %v1029 = vmul.f32 %v1024, 1.442695
        %v1030 = vpow.pop %v1029
        %v1031 = vmul.f32 %v1025, 1.442695
        %v1032 = vpow.pop %v1031
        %v1033 = vmul.f32 %v1026, 1.442695
        %v1034 = vpow.pop %v1033
        %1035 = vadd.xlane.f32.xlu0 %v1028
        %v1036 = vpop.xlane.xlu0 %1035
        %1037 = vadd.xlane.f32.xlu0 %v1030
        %v1038 = vpop.xlane.xlu0 %1037
        %1039 = vadd.xlane.f32.xlu0 %v1032
        %v1040 = vpop.xlane.xlu0 %1039
        %1041 = vadd.xlane.f32.xlu0 %v1034
        %v1042 = vpop.xlane.xlu0 %1041
        %v1043 = vrcp.pop %v1036
        %v1044 = vrcp.pop %v1038
        %v1045 = vrcp.pop %v1040
        %v1046 = vrcp.pop %v1042
        %v1047 = vmul.f32 %v1028, %v1043
        %v1048 = vmul.f32 %v1030, %v1044
        %v1049 = vmul.f32 %v1032, %v1045
        %v1050 = vmul.f32 %v1034, %v1046
        %1051 = vst [vmem:[%s283] sm:$0xff] %v1047
        %1052 = vst [vmem:[%s283 + $0x8] sm:$0xff] %v1048
        %1053 = vst [vmem:[%s283 + $0x10] sm:$0xff] %v1049
        %1054 = vst [vmem:[%s283 + $0x18] sm:$0xff] %v1050
        %s1055 = sand.u32 %s168, 1
        %s1056 = scalar_lea.sflag [#allocation3], %s1055
        %s1057 = sand.u32 %s168, 1
        %s1058 = smul.addr %s1057, 32
        %s1059 = scalar_lea.vmem [#allocation2], %s1058
        // Predicated region
        $region41: #{tpu_custom_call.1} parent=39 // pred_check
          %p1060 = pneg %p178
        $region42: #{tpu_custom_call.1} parent=39 // pred_check_branch
          %1062 = sbr.rel (%p1060) target = $region44
        $region43: #{tpu_custom_call.1} parent=39 // pred_region
          %s1063 = smul.u32 4, %s24
          %1065 = vsyncadd %s1056, 0
          %s1066 = smul.addr %s23, 4
          %s1067 = sadd.s32 %s1063, %s1066
          %s1068 = smul.addr %s1067, 8
          %s1069 = scalar_lea.hbm %s5, %s1068
          %s1070 = sshll.u32 %s1059, 4
          %s1071 = int_to_ptr.vmem [resolvable:$true] %s1070
          %s1072 = sshll.u32 %s1069, 4
          %s1073 = int_to_ptr.hbm [resolvable:$true] %s1072
          %1078 = dma.vmem_to_hbm [thread:$0]  %s1071, 512, %s1073, %s1056, 128, 128, 8
        $region44: #{tpu_custom_call.1} parent=39 // pred_fallthru
          _
      $region40: #{tpu_custom_call.1} parent=5 // pred_fallthru
        _
      %p1079 = scmp.le.s32.totalorder 2, %s14
      // Predicated region
      $region45: #{tpu_custom_call.1} parent=5 // pred_check
        %p1080 = pneg %p1079
      $region46: #{tpu_custom_call.1} parent=5 // pred_check_branch
        %1082 = sbr.rel (%p1080) target = $region48
      $region47: #{tpu_custom_call.1} parent=5 // pred_region
        %s1083 = ssub.s32 %s14, 2
        // Predicated region
        $region49: #{tpu_custom_call.1} parent=47 // pred_check
          %p1084 = pneg %p184
        $region50: #{tpu_custom_call.1} parent=47 // pred_check_branch
          %1086 = sbr.rel (%p1084) target = $region52
        $region51: #{tpu_custom_call.1} parent=47 // pred_region
          %s1087 = sand.u32 %s169, 1
          %s1088 = scalar_lea.sflag [#allocation3], %s1087
          %s1089 = sand.u32 %s169, 1
          %s1090 = smul.addr %s1089, 32
          %s1091 = scalar_lea.vmem [#allocation2], %s1090
          %1093 = dma.done %s1088, 512
        $region52: #{tpu_custom_call.1} parent=47 // pred_fallthru
          _
      $region48: #{tpu_custom_call.1} parent=5 // pred_fallthru
        _
    $region6: #{tpu_custom_call.1} parent=1 // loop_footer
      %s18 = sadd.s32 1, %s14
    $region7: #{tpu_custom_call.1} parent=1 // loop_footer_branch
      %13 = sbr.rel target = $region3
    $region8: #{tpu_custom_call.1} parent=1 // loop_exit
      _
    %1094 = vsyncpa [#allocation3], 1
    %s1095 = scalar_lea.sflag [#allocation3], 1
    %1096 = vsyncpa %s1095, 1

</llo_original>
